<compile_context>
chip_gen: v6e
topology: v6e:2x2x1
jax: 0.10.0
libtpu: 0.0.40
codegen_flags: <defaults>
</compile_context>

<pallas_src>
import functools

import jax
import jax.numpy as jnp
from jax.experimental import pallas as pl
from jax.experimental.pallas import tpu as pltpu


# ------------------------------ fused kernel ------------------------------ #

def _detector_kernel(sizes_ref,            # SMEM [B, 2] int32 (scalar prefetch)
                     patches_ref,          # [1, Q, P]   bf16
                     w_emb_ref,            # [P, D]      bf16
                     b_emb_ref,            # [1, D]      f32
                     w_head_ref,           # [D, HW]     bf16  (cls | box | pad)
                     b_head_ref,           # [1, HW]     f32
                     head_out_ref,         # [1, Q, HW]  f32 raw logits (+ box cols)
                     boxes_ref,            # [1, Q, 4]   f32 scaled xyxy
                     *, num_classes):
    b = pl.program_id(0)

    # ---- "model": embed -> ReLU -> fused class/box head (single lane-dense matmul)
    x = patches_ref[0]                                                # [Q, P] bf16
    feat = jnp.dot(x, w_emb_ref[...], preferred_element_type=jnp.float32)
    feat = jnp.maximum(feat + b_emb_ref[...], 0.0)                    # [Q, D] f32
    head = jnp.dot(feat.astype(w_head_ref.dtype), w_head_ref[...],
                   preferred_element_type=jnp.float32)
    head = head + b_head_ref[...]                                     # [Q, HW] f32
    head_out_ref[0] = head                                            # raw logits out

    # ---- "postprocessor" box epilogue (pure VPU; no MXU, no extra HBM pass)
    # sigmoid(cxcywh) -> xyxy -> scale by per-image (W, H) from SMEM.
    box = jax.nn.sigmoid(head[:, num_classes:num_classes + 4])        # [Q, 4] cxcywh
    cxcy = box[:, 0:2]
    wh = box[:, 2:4]
    xyxy = jnp.concatenate([cxcy - 0.5 * wh, cxcy + 0.5 * wh], axis=-1)  # [Q, 4]

    w = sizes_ref[b, 0].astype(jnp.float32)
    h = sizes_ref[b, 1].astype(jnp.float32)
    col = jax.lax.broadcasted_iota(jnp.int32, xyxy.shape, 1)
    scale = jnp.where(col % 2 == 0, w, h)                             # W,H,W,H
    boxes_ref[0] = xyxy * scale


# ------------------------------- wrapper ----------------------------------- #

def run_detector(patches, orig_target_sizes, params):
    """One fused pallas_call: head + postprocess epilogue, grid over batch."""
    B, Q, P = patches.shape
    D = params["w_emb"].shape[1]
    HW = params["w_head"].shape[1]          # padded head width (multiple of 128)
    C = params["num_classes"]

    kernel = functools.partial(_detector_kernel, num_classes=C)

    grid_spec = pltpu.PrefetchScalarGridSpec(
        num_scalar_prefetch=1,              # orig_target_sizes lives in SMEM
        grid=(B,),
        in_specs=[
            pl.BlockSpec((1, Q, P), lambda b, sz: (b, 0, 0)),
            pl.BlockSpec((P, D), lambda b, sz: (0, 0)),     # weights stay resident
            pl.BlockSpec((1, D), lambda b, sz: (0, 0)),
            pl.BlockSpec((D, HW), lambda b, sz: (0, 0)),
            pl.BlockSpec((1, HW), lambda b, sz: (0, 0)),
        ],
        out_specs=[
            pl.BlockSpec((1, Q, HW), lambda b, sz: (b, 0, 0)),
            pl.BlockSpec((1, Q, 4), lambda b, sz: (b, 0, 0)),
        ],
    )

    head_raw, boxes_xyxy = pl.pallas_call(
        kernel,
        grid_spec=grid_spec,
        out_shape=(jax.ShapeDtypeStruct((B, Q, HW), jnp.float32),
                   jax.ShapeDtypeStruct((B, Q, 4), jnp.float32)),
        compiler_params=pltpu.CompilerParams(
            dimension_semantics=("parallel",),          # megacore / v7x 2-TC split
            vmem_limit_bytes=32 * 1024 * 1024),
    )(orig_target_sizes.astype(jnp.int32), patches,
      params["w_emb"], params["b_emb"], params["w_head"], params["b_head"])
    return head_raw, boxes_xyxy


def deep_tracker_forward(images, orig_target_sizes, params,
                         patch_size=4, num_top_queries=5):
    """Equivalent of Model.forward(images, orig_target_sizes)."""
    B, Cc, H, W = images.shape
    p = patch_size
    Q = (H // p) * (W // p)
    # glue: NCHW -> [B, Q, P] patches (bf16 to halve DMA bytes; f32 accumulate).
    # TODO(synk): at real image sizes express patchify via the BlockSpec index_map
    #             instead of a wrapper transpose.
    patches = images.reshape(B, Cc, H // p, p, W // p, p)
    patches = patches.transpose(0, 2, 4, 1, 3, 5).reshape(
        B, Q, Cc * p * p).astype(jnp.bfloat16)

    head_raw, boxes_xyxy = run_detector(patches, orig_target_sizes, params)

    # top-k over flattened (query, class). Sigmoid is monotonic, so select on raw
    # logits and apply sigmoid only to the k winners (matches original scores).
    # TODO(synk): small-k top-k selection kept in plain JAX (no clean Pallas op).
    C = params["num_classes"]
    logits = head_raw[:, :, :C]                                  # drop pad columns
    flat = logits.reshape(B, Q * C)
    top_logits, top_idx = jax.lax.top_k(flat, num_top_queries)
    top_scores = jax.nn.sigmoid(top_logits)
    labels = top_idx % C
    qidx = top_idx // C
    sel_boxes = jnp.take_along_axis(boxes_xyxy, qidx[..., None], axis=1)
    return labels, sel_boxes, top_scores


def make_params(key, patch_dim, hidden, num_classes, head_width=128):
    """Synthetic deterministic weights; class+box heads fused into one [D, 128]."""
    assert head_width >= num_classes + 4 and head_width % 128 == 0
    ks = jax.random.split(key, 3)
    s = 0.05
    w_emb = s * jax.random.normal(ks[0], (patch_dim, hidden), jnp.float32)
    w_cls = s * jax.random.normal(ks[1], (hidden, num_classes), jnp.float32)
    w_box = s * jax.random.normal(ks[2], (hidden, 4), jnp.float32)
    w_head = jnp.zeros((hidden, head_width), jnp.float32)
    w_head = w_head.at[:, :num_classes].set(w_cls)
    w_head = w_head.at[:, num_classes:num_classes + 4].set(w_box)
    return {
        "w_emb": w_emb.astype(jnp.bfloat16),
        "b_emb": jnp.zeros((1, hidden), jnp.float32),
        "w_head": w_head.astype(jnp.bfloat16),
        "b_head": jnp.zeros((1, head_width), jnp.float32),
        "num_classes": num_classes,
    }


if __name__ == "__main__":
    key = jax.random.PRNGKey(0)
    k_img, k_par = jax.random.split(key)

    B, Cc, H, W = 2, 3, 16, 16
    patch_size = 4
    hidden = 128          # lane-dense embed dim
    num_classes = 8

    images = jax.random.normal(k_img, (B, Cc, H, W), jnp.float32)
    orig_target_sizes = jnp.array([[640, 480], [320, 240]], dtype=jnp.int32)
    params = make_params(k_par, Cc * patch_size * patch_size, hidden, num_classes)

    labels, boxes, scores = deep_tracker_forward(
        images, orig_target_sizes, params,
        patch_size=patch_size, num_top_queries=5)
    jax.block_until_ready((labels, boxes, scores))

    assert labels.shape == (B, 5)
    assert boxes.shape == (B, 5, 4)
    assert scores.shape == (B, 5)
    print("KERNEL_OK")
</pallas_src>

<mosaic_0001>
module attributes {stable_mosaic.version = 11 : i64} {
  func.func @_detector_kernel(%arg0: i32, %arg1: memref<2x2xi32, #tpu.memory_space<smem>>, %arg2: memref<1x16x48xbf16, #tpu.memory_space<vmem>>, %arg3: memref<48x128xbf16, #tpu.memory_space<vmem>>, %arg4: memref<1x128xf32, #tpu.memory_space<vmem>>, %arg5: memref<128x128xbf16, #tpu.memory_space<vmem>>, %arg6: memref<1x128xf32, #tpu.memory_space<vmem>>, %arg7: memref<1x16x128xf32, #tpu.memory_space<vmem>>, %arg8: memref<1x16x4xf32, #tpu.memory_space<vmem>>) attributes {dimension_semantics = [#tpu.dimension_semantics<parallel>], iteration_bounds = array<i64: 2>, scalar_prefetch = 1 : i64, scratch_operands = 0 : i64, tpu.core_type = #tpu.core_type<tc>, window_params = [{transform_indices = @transform_0, window_bounds = array<i64: 1, 16, 48>}, {pipeline_mode = #tpu.pipeline_mode<synchronous>, transform_indices = @transform_1, window_bounds = array<i64: 48, 128>}, {pipeline_mode = #tpu.pipeline_mode<synchronous>, transform_indices = @transform_2, window_bounds = array<i64: 1, 128>}, {pipeline_mode = #tpu.pipeline_mode<synchronous>, transform_indices = @transform_3, window_bounds = array<i64: 128, 128>}, {pipeline_mode = #tpu.pipeline_mode<synchronous>, transform_indices = @transform_4, window_bounds = array<i64: 1, 128>}, {transform_indices = @transform_5, window_bounds = array<i64: 1, 16, 128>}, {transform_indices = @transform_6, window_bounds = array<i64: 1, 16, 4>}]} {
    %c0 = arith.constant 0 : index
    %c0_0 = arith.constant 0 : index
    %c0_1 = arith.constant 0 : index
    %0 = vector.load %arg2[%c0, %c0_0, %c0_1] : memref<1x16x48xbf16, #tpu.memory_space<vmem>>, vector<1x16x48xbf16>
    %1 = vector.shape_cast %0 : vector<1x16x48xbf16> to vector<16x48xbf16>
    %c0_2 = arith.constant 0 : index
    %c0_3 = arith.constant 0 : index
    %2 = vector.load %arg3[%c0_2, %c0_3] : memref<48x128xbf16, #tpu.memory_space<vmem>>, vector<48x128xbf16>
    %cst = arith.constant dense<0.000000e+00> : vector<16x128xf32>
    %3 = tpu.matmul %1, %2, %cst {dimension_numbers = #tpu.dot_dimension_numbers<[1], [0], [0], [1], [0, 0, 1, 1], [], []>} : vector<16x48xbf16>, vector<48x128xbf16>, vector<16x128xf32> -> vector<16x128xf32>
    %c0_4 = arith.constant 0 : index
    %c0_5 = arith.constant 0 : index
    %4 = vector.load %arg4[%c0_4, %c0_5] : memref<1x128xf32, #tpu.memory_space<vmem>>, vector<1x128xf32>
    %5 = vector.broadcast %4 : vector<1x128xf32> to vector<16x128xf32>
    %6 = arith.addf %3, %5 : vector<16x128xf32>
    %cst_6 = arith.constant 0.000000e+00 : f32
    %7 = vector.broadcast %cst_6 : f32 to vector<16x128xf32>
    %8 = arith.maximumf %6, %7 : vector<16x128xf32>
    %9 = arith.truncf %8 : vector<16x128xf32> to vector<16x128xbf16>
    %c0_7 = arith.constant 0 : index
    %c0_8 = arith.constant 0 : index
    %10 = vector.load %arg5[%c0_7, %c0_8] : memref<128x128xbf16, #tpu.memory_space<vmem>>, vector<128x128xbf16>
    %cst_9 = arith.constant dense<0.000000e+00> : vector<16x128xf32>
    %11 = tpu.matmul %9, %10, %cst_9 {dimension_numbers = #tpu.dot_dimension_numbers<[1], [0], [0], [1], [0, 0, 1, 1], [], []>} : vector<16x128xbf16>, vector<128x128xbf16>, vector<16x128xf32> -> vector<16x128xf32>
    %c0_10 = arith.constant 0 : index
    %c0_11 = arith.constant 0 : index
    %12 = vector.load %arg6[%c0_10, %c0_11] : memref<1x128xf32, #tpu.memory_space<vmem>>, vector<1x128xf32>
    %13 = vector.broadcast %12 : vector<1x128xf32> to vector<16x128xf32>
    %14 = arith.addf %11, %13 : vector<16x128xf32>
    %c0_12 = arith.constant 0 : index
    %c0_13 = arith.constant 0 : index
    %c0_14 = arith.constant 0 : index
    %15 = vector.load %arg7[%c0_12, %c0_13, %c0_14] : memref<1x16x128xf32, #tpu.memory_space<vmem>>, vector<1x16x128xf32>
    %16 = vector.shape_cast %15 : vector<1x16x128xf32> to vector<16x128xf32>
    %17 = vector.shape_cast %14 : vector<16x128xf32> to vector<1x16x128xf32>
    tpu.vector_store %arg7[%c0_12, %c0_13, %c0_14], %17 {strides = array<i32>} : memref<1x16x128xf32, #tpu.memory_space<vmem>>, vector<1x16x128xf32>,
    %18 = vector.extract_strided_slice %14 {offsets = [0, 8], sizes = [16, 4], strides = [1, 1]} : vector<16x128xf32> to vector<16x4xf32>
    %19 = arith.negf %18 : vector<16x4xf32>
    %20 = math.exp %19 : vector<16x4xf32>
    %cst_15 = arith.constant 1.000000e+00 : f32
    %21 = vector.broadcast %cst_15 : f32 to vector<16x4xf32>
    %22 = arith.addf %21, %20 : vector<16x4xf32>
    %23 = arith.divf %21, %22 : vector<16x4xf32>
    %24 = vector.extract_strided_slice %23 {offsets = [0, 0], sizes = [16, 2], strides = [1, 1]} : vector<16x4xf32> to vector<16x2xf32>
    %25 = vector.extract_strided_slice %23 {offsets = [0, 2], sizes = [16, 2], strides = [1, 1]} : vector<16x4xf32> to vector<16x2xf32>
    %cst_16 = arith.constant 5.000000e-01 : f32
    %26 = vector.broadcast %cst_16 : f32 to vector<16x2xf32>
    %27 = arith.mulf %26, %25 : vector<16x2xf32>
    %28 = arith.subf %24, %27 : vector<16x2xf32>
    %cst_17 = arith.constant 5.000000e-01 : f32
    %29 = vector.broadcast %cst_17 : f32 to vector<16x2xf32>
    %30 = arith.mulf %29, %25 : vector<16x2xf32>
    %31 = arith.addf %24, %30 : vector<16x2xf32>
    %32 = tpu.concatenate %28, %31 in 1 : vector<16x2xf32>, vector<16x2xf32> -> vector<16x4xf32>
    %33 = arith.index_cast %arg0 : i32 to index
    %c0_18 = arith.constant 0 : index
    %34 = memref.load %arg1[%33, %c0_18] : memref<2x2xi32, #tpu.memory_space<smem>>
    %35 = arith.sitofp %34 : i32 to f32
    %36 = arith.index_cast %arg0 : i32 to index
    %c1 = arith.constant 1 : index
    %37 = memref.load %arg1[%36, %c1] : memref<2x2xi32, #tpu.memory_space<smem>>
    %38 = arith.sitofp %37 : i32 to f32
    %39 = tpu.iota {dimensions = array<i32: 1>} : vector<16x4xi32>
    %c2_i32 = arith.constant 2 : i32
    %c0_i32 = arith.constant 0 : i32
    %40 = arith.cmpi eq, %c2_i32, %c0_i32 : i32
    %c1_i32 = arith.constant 1 : i32
    %41 = arith.select %40, %c1_i32, %c2_i32 : i32
    %42 = vector.broadcast %41 : i32 to vector<16x4xi32>
    %43 = arith.remsi %39, %42 : vector<16x4xi32>
    %c0_i32_19 = arith.constant 0 : i32
    %44 = vector.broadcast %c0_i32_19 : i32 to vector<16x4xi32>
    %45 = arith.cmpi ne, %43, %44 : vector<16x4xi32>
    %c0_i32_20 = arith.constant 0 : i32
    %46 = vector.broadcast %c0_i32_20 : i32 to vector<16x4xi32>
    %47 = arith.cmpi slt, %43, %46 : vector<16x4xi32>
    %c0_i32_21 = arith.constant 0 : i32
    %48 = arith.cmpi slt, %41, %c0_i32_21 : i32
    %49 = vector.broadcast %48 : i1 to vector<16x4xi1>
    %50 = vector.broadcast %49 : vector<16x4xi1> to vector<16x4xi1>
    %51 = arith.xori %47, %50 : vector<16x4xi1>
    %52 = arith.andi %51, %45 : vector<16x4xi1>
    %53 = vector.broadcast %41 : i32 to vector<16x4xi32>
    %54 = arith.addi %43, %53 : vector<16x4xi32>
    %55 = arith.select %52, %54, %43 : vector<16x4xi1>, vector<16x4xi32>
    %c0_i32_22 = arith.constant 0 : i32
    %56 = vector.broadcast %c0_i32_22 : i32 to vector<16x4xi32>
    %57 = arith.cmpi eq, %55, %56 : vector<16x4xi32>
    %58 = vector.broadcast %35 : f32 to vector<16x4xf32>
    %59 = vector.broadcast %38 : f32 to vector<16x4xf32>
    %60 = arith.select %57, %58, %59 : vector<16x4xi1>, vector<16x4xf32>
    %61 = arith.mulf %32, %60 : vector<16x4xf32>
    %c0_23 = arith.constant 0 : index
    %c0_24 = arith.constant 0 : index
    %c0_25 = arith.constant 0 : index
    %62 = vector.load %arg8[%c0_23, %c0_24, %c0_25] : memref<1x16x4xf32, #tpu.memory_space<vmem>>, vector<1x16x4xf32>
    %63 = vector.shape_cast %62 : vector<1x16x4xf32> to vector<16x4xf32>
    %64 = vector.shape_cast %61 : vector<16x4xf32> to vector<1x16x4xf32>
    tpu.vector_store %arg8[%c0_23, %c0_24, %c0_25], %64 {strides = array<i32>} : memref<1x16x4xf32, #tpu.memory_space<vmem>>, vector<1x16x4xf32>,
    return
  }
  func.func @transform_0(%arg0: i32, %arg1: memref<2x2xi32, #tpu.memory_space<smem>>) -> (i32, i32, i32) {
    %c0_i32 = arith.constant 0 : i32
    %c0_i32_0 = arith.constant 0 : i32
    %c0_i32_1 = arith.constant 0 : i32
    return %arg0, %c0_i32, %c0_i32_0 : i32, i32, i32
  }
  func.func @transform_1(%arg0: i32, %arg1: memref<2x2xi32, #tpu.memory_space<smem>>) -> (i32, i32) {
    %c0_i32 = arith.constant 0 : i32
    %c0_i32_0 = arith.constant 0 : i32
    %c0_i32_1 = arith.constant 0 : i32
    return %c0_i32, %c0_i32_0 : i32, i32
  }
  func.func @transform_2(%arg0: i32, %arg1: memref<2x2xi32, #tpu.memory_space<smem>>) -> (i32, i32) {
    %c0_i32 = arith.constant 0 : i32
    %c0_i32_0 = arith.constant 0 : i32
    %c0_i32_1 = arith.constant 0 : i32
    return %c0_i32, %c0_i32_0 : i32, i32
  }
  func.func @transform_3(%arg0: i32, %arg1: memref<2x2xi32, #tpu.memory_space<smem>>) -> (i32, i32) {
    %c0_i32 = arith.constant 0 : i32
    %c0_i32_0 = arith.constant 0 : i32
    %c0_i32_1 = arith.constant 0 : i32
    return %c0_i32, %c0_i32_0 : i32, i32
  }
  func.func @transform_4(%arg0: i32, %arg1: memref<2x2xi32, #tpu.memory_space<smem>>) -> (i32, i32) {
    %c0_i32 = arith.constant 0 : i32
    %c0_i32_0 = arith.constant 0 : i32
    %c0_i32_1 = arith.constant 0 : i32
    return %c0_i32, %c0_i32_0 : i32, i32
  }
  func.func @transform_5(%arg0: i32, %arg1: memref<2x2xi32, #tpu.memory_space<smem>>) -> (i32, i32, i32) {
    %c0_i32 = arith.constant 0 : i32
    %c0_i32_0 = arith.constant 0 : i32
    %c0_i32_1 = arith.constant 0 : i32
    return %arg0, %c0_i32, %c0_i32_0 : i32, i32, i32
  }
  func.func @transform_6(%arg0: i32, %arg1: memref<2x2xi32, #tpu.memory_space<smem>>) -> (i32, i32, i32) {
    %c0_i32 = arith.constant 0 : i32
    %c0_i32_0 = arith.constant 0 : i32
    %c0_i32_1 = arith.constant 0 : i32
    return %arg0, %c0_i32, %c0_i32_0 : i32, i32, i32
  }
}

</mosaic_0001>

<llo_original>
// kernel: tpu_custom_call.1
$region0: #{tpu_custom_call.1}
  #allocation0 [shape = 'u32[]', space=smem, size = 0x4, offset = 0x4, fixed_abs, tag = 'smem constant byte address 0x4 - core index']
  #allocation1 [shape = 'u32[144,128]{1,0:T(1,128)}', space=vmem, size = 0x12000, scoped, tag = 'internal scratch']
  #allocation2 [shape = 's32[1]{0}', space=sflag, size = 0x4, scoped, tag = 'scoped memory for tpu_custom_call.1']
  #allocation3 [shape = 'u8[1024]{0}', space=smem, size = 0x400, scoped, tag = 'prefetched SMEM operand 0']
  %s0 = inlined_call_operand.hbm [shape: s32[2,2], index: 0, kind: input, shape index: {}]
  %s1 = inlined_call_operand.hbm [shape: bf16[2,16,48], index: 1, kind: input, shape index: {}]
  %s2 = inlined_call_operand.hbm [shape: bf16[48,128], index: 2, kind: input, shape index: {}]
  %s3 = inlined_call_operand.vmem [shape: f32[1,128], index: 3, kind: input, shape index: {}]
  %s4 = inlined_call_operand.hbm [shape: bf16[128,128], index: 4, kind: input, shape index: {}]
  %s5 = inlined_call_operand.vmem [shape: f32[1,128], index: 5, kind: input, shape index: {}]
  %s6 = inlined_call_operand.hbm [shape: f32[2,16,128], index: 6, kind: output, shape index: {0}]
  %s7 = inlined_call_operand.vmem [shape: f32[2,16,4], index: 7, kind: output, shape index: {1}]
  %8 = xla_tuple %s6, %s7
  %s9 = sld [smem:[#allocation0]]
  $region73: #{tpu_custom_call.1} parent=0
    _
  %s11 = ssub.s32 1, %s9
  %s12 = scalar_select 0, %s11, %s9
  %14 = dma.hbm_to_smem %s0, 32, [#allocation3], [#allocation2]
  %15 = dma.done [#allocation2], 32
  %16 = sfence
  $region1: #{tpu_custom_call.1} parent=0
    #allocation4 [shape = 'u8[8192]{0}', space=vmem, size = 0x2000, scoped, tag = 'input window, operand 1']
    #allocation5 [shape = 's32[2]{0}', space=sflag, size = 0x8, scoped, tag = 'scoped memory for tpu_custom_call.1']
    #allocation6 [shape = 's32[2]{0}', space=sflag, size = 0x8, scoped, tag = 'scoped memory for tpu_custom_call.1']
    #allocation7 [shape = 'u8[12288]{0}', space=vmem, size = 0x3000, scoped, tag = 'input window, operand 2, single buffered']
    #allocation8 [shape = 's32[1]{0}', space=sflag, size = 0x4, scoped, tag = 'scoped memory for tpu_custom_call.1']
    #allocation9 [shape = 'u8[32768]{0}', space=vmem, size = 0x8000, scoped, tag = 'input window, operand 4, single buffered']
    #allocation10 [shape = 'u8[16384]{0}', space=vmem, size = 0x4000, scoped, tag = 'output window, operand 0']
    %17 = vsyncpa [#allocation5], 0
    %s18 = scalar_lea.sflag [#allocation5], 1
    %19 = vsyncpa %s18, 0
    %20 = vsyncpa [#allocation8], 0
    %21 = vsyncpa [#allocation6], 0
    %s22 = scalar_lea.sflag [#allocation6], 1
    %23 = vsyncpa %s22, 0
    loop: start=0, step=1, limit=4
    $region2: #{tpu_custom_call.1} parent=1 // loop_pre_header
      _
    $region3: #{tpu_custom_call.1} parent=1 // loop_header
      %s25 = sphi 0, %s29
      %p26 = scmp.ge.s32.totalorder %s25, 4
      %s35 = sphi 0, %s37
      %s38 = sphi 0, %s35
      %s39 = sphi 0, %s38
      %s55 = sphi 0, %s39
      %s59 = sphi 0, %s59
      %s61 = sphi 0, %s59
      %s62 = sphi 0, %s61
      %s76 = sphi 0, %s62
      %s80 = sphi 0, %s80
      %s82 = sphi 0, %s80
      %s83 = sphi 0, %s82
      %s97 = sphi 0, %s83
      %s101 = sphi 0, %s101
      %s103 = sphi 0, %s101
      %s104 = sphi 0, %s103
      %s118 = sphi 0, %s104
      %s122 = sphi 0, %s122
      %s124 = sphi 0, %s122
      %s125 = sphi 0, %s124
      %s139 = sphi 0, %s125
      %s145 = sphi 0, %s147
      %s148 = sphi 0, %s145
      %s149 = sphi 0, %s148
      %s165 = sphi 0, %s149
      %s171 = sphi 0, %s173
      %s174 = sphi 0, %s171
      %s175 = sphi 0, %s174
      %s191 = sphi 0, %s175
    $region4: #{tpu_custom_call.1} parent=1 // loop_header_branch
      %28 = sbr.rel (%p26) target = $region8
    $region5: #{tpu_custom_call.1} parent=1 // loop_body
      %s30 = ssub.s32 %s25, 1
      %s31 = ssub.s32 %s25, 2
      %s32 = sadd.s32 %s25, 1
      %s33 = ssub.s32 %s25, %s32
      %p34 = scmp.eq.s32.totalorder %s33, 0
      %s36 = sadd.s32 %s35, 1
      %s37 = scalar_select %p34, %s35, %s36
      %p40 = pneg %p34
      %p41 = scmp.eq.s32.totalorder %s25, 1
      %p42 = por %p40, %p41
      %p43 = scmp.ne.s32.totalorder %s35, %s38
      %p44 = scmp.eq.s32.totalorder %s25, 0
      %p45 = por %p43, %p44
      %p46 = scmp.ne.s32.totalorder %s35, %s38
      %p47 = scmp.eq.s32.totalorder %s30, 1
      %p48 = por %p46, %p47
      %p49 = scmp.ne.s32.totalorder %s38, %s39
      %p50 = scmp.eq.s32.totalorder %s30, 0
      %p51 = por %p49, %p50
      %p52 = scmp.ne.s32.totalorder %s38, %s39
      %p53 = scmp.eq.s32.totalorder %s31, 1
      %p54 = por %p52, %p53
      %p56 = scmp.ne.s32.totalorder %s39, %s55
      %p57 = scmp.eq.s32.totalorder %s31, 0
      %p58 = por %p56, %p57
      %s60 = sadd.s32 %s59, 1
      %p63 = scmp.eq.s32.totalorder %s25, 1
      %p64 = scmp.ne.s32.totalorder %s59, %s61
      %p65 = scmp.eq.s32.totalorder %s25, 0
      %p66 = por %p64, %p65
      %p67 = scmp.ne.s32.totalorder %s59, %s61
      %p68 = scmp.eq.s32.totalorder %s30, 1
      %p69 = por %p67, %p68
      %p70 = scmp.ne.s32.totalorder %s61, %s62
      %p71 = scmp.eq.s32.totalorder %s30, 0
      %p72 = por %p70, %p71
      %p73 = scmp.ne.s32.totalorder %s61, %s62
      %p74 = scmp.eq.s32.totalorder %s31, 1
      %p75 = por %p73, %p74
      %p77 = scmp.ne.s32.totalorder %s62, %s76
      %p78 = scmp.eq.s32.totalorder %s31, 0
      %p79 = por %p77, %p78
      %s81 = sadd.s32 %s80, 1
      %p84 = scmp.eq.s32.totalorder %s25, 1
      %p85 = scmp.ne.s32.totalorder %s80, %s82
      %p86 = scmp.eq.s32.totalorder %s25, 0
      %p87 = por %p85, %p86
      %p88 = scmp.ne.s32.totalorder %s80, %s82
      %p89 = scmp.eq.s32.totalorder %s30, 1
      %p90 = por %p88, %p89
      %p91 = scmp.ne.s32.totalorder %s82, %s83
      %p92 = scmp.eq.s32.totalorder %s30, 0
      %p93 = por %p91, %p92
      %p94 = scmp.ne.s32.totalorder %s82, %s83
      %p95 = scmp.eq.s32.totalorder %s31, 1
      %p96 = por %p94, %p95
      %p98 = scmp.ne.s32.totalorder %s83, %s97
      %p99 = scmp.eq.s32.totalorder %s31, 0
      %p100 = por %p98, %p99
      %s102 = sadd.s32 %s101, 1
      %p105 = scmp.eq.s32.totalorder %s25, 1
      %p106 = scmp.ne.s32.totalorder %s101, %s103
      %p107 = scmp.eq.s32.totalorder %s25, 0
      %p108 = por %p106, %p107
      %p109 = scmp.ne.s32.totalorder %s101, %s103
      %p110 = scmp.eq.s32.totalorder %s30, 1
      %p111 = por %p109, %p110
      %p112 = scmp.ne.s32.totalorder %s103, %s104
      %p113 = scmp.eq.s32.totalorder %s30, 0
      %p114 = por %p112, %p113
      %p115 = scmp.ne.s32.totalorder %s103, %s104
      %p116 = scmp.eq.s32.totalorder %s31, 1
      %p117 = por %p115, %p116
      %p119 = scmp.ne.s32.totalorder %s104, %s118
      %p120 = scmp.eq.s32.totalorder %s31, 0
      %p121 = por %p119, %p120
      %s123 = sadd.s32 %s122, 1
      %p126 = scmp.eq.s32.totalorder %s25, 1
      %p127 = scmp.ne.s32.totalorder %s122, %s124
      %p128 = scmp.eq.s32.totalorder %s25, 0
      %p129 = por %p127, %p128
      %p130 = scmp.ne.s32.totalorder %s122, %s124
      %p131 = scmp.eq.s32.totalorder %s30, 1
      %p132 = por %p130, %p131
      %p133 = scmp.ne.s32.totalorder %s124, %s125
      %p134 = scmp.eq.s32.totalorder %s30, 0
      %p135 = por %p133, %p134
      %p136 = scmp.ne.s32.totalorder %s124, %s125
      %p137 = scmp.eq.s32.totalorder %s31, 1
      %p138 = por %p136, %p137
      %p140 = scmp.ne.s32.totalorder %s125, %s139
      %p141 = scmp.eq.s32.totalorder %s31, 0
      %p142 = por %p140, %p141
      %s143 = ssub.s32 %s25, %s32
      %p144 = scmp.eq.s32.totalorder %s143, 0
      %s146 = sadd.s32 %s145, 1
      %s147 = scalar_select %p144, %s145, %s146
      %p150 = pneg %p144
      %p151 = scmp.eq.s32.totalorder %s25, 1
      %p152 = por %p150, %p151
      %p153 = scmp.ne.s32.totalorder %s145, %s148
      %p154 = scmp.eq.s32.totalorder %s25, 0
      %p155 = por %p153, %p154
      %p156 = scmp.ne.s32.totalorder %s145, %s148
      %p157 = scmp.eq.s32.totalorder %s30, 1
      %p158 = por %p156, %p157
      %p159 = scmp.ne.s32.totalorder %s148, %s149
      %p160 = scmp.eq.s32.totalorder %s30, 0
      %p161 = por %p159, %p160
      %p162 = scmp.ne.s32.totalorder %s148, %s149
      %p163 = scmp.eq.s32.totalorder %s31, 1
      %p164 = por %p162, %p163
      %p166 = scmp.ne.s32.totalorder %s149, %s165
      %p167 = scmp.eq.s32.totalorder %s31, 0
      %p168 = por %p166, %p167
      %s169 = ssub.s32 %s25, %s32
      %p170 = scmp.eq.s32.totalorder %s169, 0
      %s172 = sadd.s32 %s171, 1
      %s173 = scalar_select %p170, %s171, %s172
      %p176 = pneg %p170
      %p177 = scmp.eq.s32.totalorder %s25, 1
      %p178 = por %p176, %p177
      %p179 = scmp.ne.s32.totalorder %s171, %s174
      %p180 = scmp.eq.s32.totalorder %s25, 0
      %p181 = por %p179, %p180
      %p182 = scmp.ne.s32.totalorder %s171, %s174
      %p183 = scmp.eq.s32.totalorder %s30, 1
      %p184 = por %p182, %p183
      %p185 = scmp.ne.s32.totalorder %s174, %s175
      %p186 = scmp.eq.s32.totalorder %s30, 0
      %p187 = por %p185, %p186
      %p188 = scmp.ne.s32.totalorder %s174, %s175
      %p189 = scmp.eq.s32.totalorder %s31, 1
      %p190 = por %p188, %p189
      %p192 = scmp.ne.s32.totalorder %s175, %s191
      %p193 = scmp.eq.s32.totalorder %s31, 0
      %p194 = por %p192, %p193
      %p195 = scmp.le.s32.totalorder 1, %s25
      %p196 = scmp.lt.s32.totalorder %s25, 3
      %p197 = pnand %p195, %p196
      %p198 = pneg %p197
      // Predicated region
      $region9: #{tpu_custom_call.1} parent=5 // pred_check
        _
      $region10: #{tpu_custom_call.1} parent=5 // pred_check_branch
        %200 = sbr.rel (%p197) target = $region12
      $region11: #{tpu_custom_call.1} parent=5 // pred_region
        %s201 = ssub.s32 %s25, 1
        // Predicated region
        $region13: #{tpu_custom_call.1} parent=11 // pred_check
          %p202 = pneg %p72
        $region14: #{tpu_custom_call.1} parent=11 // pred_check_branch
          %204 = sbr.rel (%p202) target = $region16
        $region15: #{tpu_custom_call.1} parent=11 // pred_region
          %s206 = ssub.s32 384, 384
          %207 = vsyncadd [#allocation8], %s206
          %s208 = sshll.u32 [#allocation7], 4
          %s209 = int_to_ptr.vmem [resolvable:$true] %s208
          %214 = dma.hbm_to_vmem [thread:$0]  %s2, 384, %s209, [#allocation8], 64, 64, 4
        $region16: #{tpu_custom_call.1} parent=11 // pred_fallthru
          _
        // Predicated region
        $region17: #{tpu_custom_call.1} parent=11 // pred_check
          %p215 = pneg %p93
        $region18: #{tpu_custom_call.1} parent=11 // pred_check_branch
          %217 = sbr.rel (%p215) target = $region20
        $region19: #{tpu_custom_call.1} parent=11 // pred_region
          _
        $region20: #{tpu_custom_call.1} parent=11 // pred_fallthru
          _
        // Predicated region
        $region21: #{tpu_custom_call.1} parent=11 // pred_check
          %p218 = pneg %p114
        $region22: #{tpu_custom_call.1} parent=11 // pred_check_branch
          %220 = sbr.rel (%p218) target = $region24
        $region23: #{tpu_custom_call.1} parent=11 // pred_region
          %s222 = ssub.s32 1024, 1024
          %223 = vsyncadd [#allocation8], %s222
          %s224 = sshll.u32 [#allocation9], 4
          %s225 = int_to_ptr.vmem [resolvable:$true] %s224
          %230 = dma.hbm_to_vmem [thread:$0]  %s4, 1024, %s225, [#allocation8], 64, 64, 4
        $region24: #{tpu_custom_call.1} parent=11 // pred_fallthru
          _
        // Predicated region
        $region25: #{tpu_custom_call.1} parent=11 // pred_check
          %p231 = pneg %p135
        $region26: #{tpu_custom_call.1} parent=11 // pred_check_branch
          %233 = sbr.rel (%p231) target = $region28
        $region27: #{tpu_custom_call.1} parent=11 // pred_region
          _
        $region28: #{tpu_custom_call.1} parent=11 // pred_fallthru
          _
      $region12: #{tpu_custom_call.1} parent=5 // pred_fallthru
        _
      %p234 = scmp.lt.s32.totalorder %s25, 2
      // Predicated region
      $region29: #{tpu_custom_call.1} parent=5 // pred_check
        %p235 = pneg %p234
      $region30: #{tpu_custom_call.1} parent=5 // pred_check_branch
        %237 = sbr.rel (%p235) target = $region32
      $region31: #{tpu_custom_call.1} parent=5 // pred_region
        // Predicated region
        $region33: #{tpu_custom_call.1} parent=31 // pred_check
          %p238 = pneg %p45
        $region34: #{tpu_custom_call.1} parent=31 // pred_check_branch
          %240 = sbr.rel (%p238) target = $region36
        $region35: #{tpu_custom_call.1} parent=31 // pred_region
          %s241 = sand.u32 %s35, 1
          %s242 = scalar_lea.sflag [#allocation5], %s241
          %s243 = sand.u32 %s35, 1
          %s244 = smul.addr %s243, 8
          %s245 = scalar_lea.vmem [#allocation4], %s244
          %s247 = ssub.s32 128, 128
          %248 = vsyncadd %s242, %s247
          %s249 = smul.addr %s25, 2
          %s250 = smul.addr %s249, 64
          %s251 = scalar_lea.hbm %s1, %s250
          %s252 = sshll.u32 %s245, 4
          %s253 = int_to_ptr.vmem [resolvable:$true] %s252
          %258 = dma.hbm_to_vmem [thread:$0]  %s251, 128, %s253, %s242, 64, 64, 4
        $region36: #{tpu_custom_call.1} parent=31 // pred_fallthru
          _
      $region32: #{tpu_custom_call.1} parent=5 // pred_fallthru
        _
      %p259 = scmp.le.s32.totalorder 1, %s25
      %p260 = scmp.lt.s32.totalorder %s25, 3
      %p261 = pnand %p259, %p260
      %p262 = pneg %p261
      // Predicated region
      $region37: #{tpu_custom_call.1} parent=5 // pred_check
        _
      $region38: #{tpu_custom_call.1} parent=5 // pred_check_branch
        %264 = sbr.rel (%p261) target = $region40
      $region39: #{tpu_custom_call.1} parent=5 // pred_region
        %s265 = ssub.s32 %s25, 1
        %s266 = sand.u32 %s38, 1
        %s267 = scalar_lea.sflag [#allocation5], %s266
        %s268 = sand.u32 %s38, 1
        %s269 = smul.addr %s268, 8
        %s270 = scalar_lea.vmem [#allocation4], %s269
        // Predicated region
        $region41: #{tpu_custom_call.1} parent=39 // pred_check
          %p271 = pneg %p51
        $region42: #{tpu_custom_call.1} parent=39 // pred_check_branch
          %273 = sbr.rel (%p271) target = $region44
        $region43: #{tpu_custom_call.1} parent=39 // pred_region
          %274 = dma.done %s267, 128
        $region44: #{tpu_custom_call.1} parent=39 // pred_fallthru
          _
        // Predicated region
        $region45: #{tpu_custom_call.1} parent=39 // pred_check
          %p275 = pneg %p72
        $region46: #{tpu_custom_call.1} parent=39 // pred_check_branch
          %277 = sbr.rel (%p275) target = $region48
        $region47: #{tpu_custom_call.1} parent=39 // pred_region
          %278 = dma.done [#allocation8], 384
        $region48: #{tpu_custom_call.1} parent=39 // pred_fallthru
          _
        // Predicated region
        $region49: #{tpu_custom_call.1} parent=39 // pred_check
          %p279 = pneg %p114
        $region50: #{tpu_custom_call.1} parent=39 // pred_check_branch
          %281 = sbr.rel (%p279) target = $region52
        $region51: #{tpu_custom_call.1} parent=39 // pred_region
          %282 = dma.done [#allocation8], 1024
        $region52: #{tpu_custom_call.1} parent=39 // pred_fallthru
          _
        %s283 = sand.u32 %s38, 1
        %s284 = scalar_lea.sflag [#allocation5], %s283
        %s285 = sand.u32 %s38, 1
        %s286 = smul.addr %s285, 8
        %s287 = scalar_lea.vmem [#allocation4], %s286
        %p288 = pneg %p51
        %p289 = pneg %p48
        %p290 = pneg %p72
        %p291 = pneg %p69
        %p292 = pneg %p93
        %p293 = pneg %p90
        %p294 = pneg %p114
        %p295 = pneg %p111
        %p296 = pneg %p135
        %p297 = pneg %p132
        %p298 = pneg %p161
        %p299 = pneg %p158
        %s300 = sand.u32 %s148, 1
        %s301 = scalar_lea.sflag [#allocation6], %s300
        %s302 = sand.u32 %s148, 1
        %s303 = smul.addr %s302, 16
        %s304 = scalar_lea.vmem [#allocation10], %s303
        %p305 = pneg %p187
        %p306 = pneg %p184
        %p307 = scmp.lt.s32.totalorder %s30, 1
        %s308 = scalar_select %p307, %s30, 1
        %s309 = smul.addr %s308, 2
        %s310 = smul.addr %s309, 8
        %s311 = scalar_lea.vmem %s7, %s310
        %p312 = scmp.lt.s32.totalorder %s30, 1
        %s313 = scalar_select %p312, %s30, 1
        %s314 = smul.addr %s313, 2
        %s315 = smul.addr %s314, 8
        %s316 = scalar_lea.vmem %s7, %s315
        %v318 = vld [vmem:[%s270] sm:$0xf]
        %v319 = vld [vmem:[%s270 + $0x4] sm:$0xf]
        %v320 = vld [vmem:[#allocation7] sm:$0xf]
        %v321 = vld [vmem:[#allocation7 + $0x4] sm:$0xf]
        %v322 = vld [vmem:[#allocation7 + $0x8] sm:$0xf]
        %v323 = vld [vmem:[#allocation7 + $0xc] sm:$0xf]
        %v324 = vld [vmem:[#allocation7 + $0x10] sm:$0xf]
        %v325 = vld [vmem:[#allocation7 + $0x14] sm:$0xf]
        %v326 = vld [vmem:[%s3] sm:$0x1]
        %v328 = vlaneseq
        %v329 = vshrl.u32 %v328, 7
        %v330 = vsub.s32 0, %v329
        %v331 = vrot.slane %v326, %v330
        %v335 = vunpack.c.l.b16 %v318
        %v336 = vunpack.c.l.b16 %v319
        %v337 = vpack.c.b16 %v336, %v335
        %v344 = vunpack.c.l.b16 %v320
        %v345 = vunpack.c.l.b16 %v321
        %v346 = vunpack.c.l.b16 %v322
        %v347 = vunpack.c.l.b16 %v323
        %v348 = vunpack.c.l.b16 %v324
        %v349 = vunpack.c.l.b16 %v325
        %v350 = vpack.c.b16 %v345, %v344
        %v351 = vpack.c.b16 %v347, %v346
        %v352 = vpack.c.b16 %v349, %v348
        %vm356 = vcmask 392192
        %v358 = vsel %vm356, %v337, 0
        %360 = vmatprep.subr.bf16.mxu0 0
        %361 = vmatpush1.bf16.msra.mxu0 0
        %362 = vmatprep.subr.bf16.mxu0 0
        %363 = vmatpush1.bf16.msra.mxu0 0
        %364 = vmatprep.subr.bf16.mxu0 0
        %365 = vmatpush1.bf16.msra.mxu0 0
        %366 = vmatprep.subr.bf16.mxu0 0
        %367 = vmatpush1.bf16.msra.mxu0 0
        %368 = vmatprep.subr.bf16.mxu0 0
        %369 = vmatpush1.bf16.msra.mxu0 0
        %370 = vmatprep.subr.bf16.mxu0 0
        %371 = vmatpush1.bf16.msra.mxu0 %v352
        %372 = vmatprep.subr.bf16.mxu0 0
        %373 = vmatpush1.bf16.msra.mxu0 %v351
        %374 = vmatprep.subr.bf16.mxu0 0
        %375 = vmatpush1.bf16.msra.mxu0 %v350
        %376 = vmatprep.subr.bf16.mxu0 0
        %377 = vmatpush2.bf16.msra.mxu0 0
        %378 = vmatprep.subr.bf16.mxu0 0
        %379 = vmatpush2.bf16.msra.mxu0 0
        %380 = vmatprep.subr.bf16.mxu0 0
        %381 = vmatpush2.bf16.msra.mxu0 0
        %382 = vmatprep.subr.bf16.mxu0 0
        %383 = vmatpush2.bf16.msra.mxu0 0
        %384 = vmatprep.subr.bf16.mxu0 0
        %385 = vmatpush2.bf16.msra.mxu0 0
        %386 = vmatprep.subr.bf16.mxu0 0
        %387 = vmatpush2.bf16.msra.mxu0 0
        %388 = vmatprep.subr.bf16.mxu0 0
        %389 = vmatpush2.bf16.msra.mxu0 0
        %390 = vmatprep.subr.bf16.mxu0 0
        %391 = vmatpush2.bf16.msra.mxu0 0
        %392 = vmatprep.mubr.bf16.mxu0 0
        %393 = vmatmul.mubr.bf16.gmra.mxu0 %v358
        %v394 = vpop.f32.mrf.mxu0
        %v395 = vadd.f32 %v331, %v394
        %v396 = vpop.f32.mrf.mxu0
        %v397 = vpop.f32.mrf.mxu0
        %v398 = vadd.f32 %v331, %v397
        %v399 = vpop.f32.mrf.mxu0
        %400 = vdwg.mxu0
        %v401 = vmax.f32 %v395, 0.0
        %v402 = vmax.f32 %v398, 0.0
        %v403 = vpack.c.bf16 %v402, %v401
        %v404 = vld [vmem:[#allocation9] sm:$0xf]
        %v405 = vld [vmem:[#allocation9 + $0x4] sm:$0xf]
        %v406 = vld [vmem:[#allocation9 + $0x8] sm:$0xf]
        %v407 = vld [vmem:[#allocation9 + $0xc] sm:$0xf]
        %v408 = vld [vmem:[#allocation9 + $0x10] sm:$0xf]
        %v409 = vld [vmem:[#allocation9 + $0x14] sm:$0xf]
        %v410 = vld [vmem:[#allocation9 + $0x18] sm:$0xf]
        %v411 = vld [vmem:[#allocation9 + $0x1c] sm:$0xf]
        %v412 = vld [vmem:[#allocation9 + $0x20] sm:$0xf]
        %v413 = vld [vmem:[#allocation9 + $0x24] sm:$0xf]
        %v414 = vld [vmem:[#allocation9 + $0x28] sm:$0xf]
        %v415 = vld [vmem:[#allocation9 + $0x2c] sm:$0xf]
        %v416 = vld [vmem:[#allocation9 + $0x30] sm:$0xf]
        %v417 = vld [vmem:[#allocation9 + $0x34] sm:$0xf]
        %v418 = vld [vmem:[#allocation9 + $0x38] sm:$0xf]
        %v419 = vld [vmem:[#allocation9 + $0x3c] sm:$0xf]
        %v420 = vld [vmem:[%s5] sm:$0x1]
        %v422 = vlaneseq
        %v423 = vshrl.u32 %v422, 7
        %v424 = vsub.s32 0, %v423
        %v425 = vrot.slane %v420, %v424
        %v443 = vunpack.c.l.b16 %v404
        %v444 = vunpack.c.l.b16 %v405
        %v445 = vunpack.c.l.b16 %v406
        %v446 = vunpack.c.l.b16 %v407
        %v447 = vunpack.c.l.b16 %v408
        %v448 = vunpack.c.l.b16 %v409
        %v449 = vunpack.c.l.b16 %v410
        %v450 = vunpack.c.l.b16 %v411
        %v451 = vunpack.c.l.b16 %v412
        %v452 = vunpack.c.l.b16 %v413
        %v453 = vunpack.c.l.b16 %v414
        %v454 = vunpack.c.l.b16 %v415
        %v455 = vunpack.c.l.b16 %v416
        %v456 = vunpack.c.l.b16 %v417
        %v457 = vunpack.c.l.b16 %v418
        %v458 = vunpack.c.l.b16 %v419
        %v459 = vpack.c.b16 %v444, %v443
        %v460 = vpack.c.b16 %v446, %v445
        %v461 = vpack.c.b16 %v448, %v447
        %v462 = vpack.c.b16 %v450, %v449
        %v463 = vpack.c.b16 %v452, %v451
        %v464 = vpack.c.b16 %v454, %v453
        %v465 = vpack.c.b16 %v456, %v455
        %v466 = vpack.c.b16 %v458, %v457
        %475 = vmatprep.subr.bf16.mxu0 0
        %476 = vmatpush1.bf16.msra.mxu0 %v466
        %477 = vmatprep.subr.bf16.mxu0 0
        %478 = vmatpush1.bf16.msra.mxu0 %v465
        %479 = vmatprep.subr.bf16.mxu0 0
        %480 = vmatpush1.bf16.msra.mxu0 %v464
        %481 = vmatprep.subr.bf16.mxu0 0
        %482 = vmatpush1.bf16.msra.mxu0 %v463
        %483 = vmatprep.subr.bf16.mxu0 0
        %484 = vmatpush1.bf16.msra.mxu0 %v462
        %485 = vmatprep.subr.bf16.mxu0 0
        %486 = vmatpush1.bf16.msra.mxu0 %v461
        %487 = vmatprep.subr.bf16.mxu0 0
        %488 = vmatpush1.bf16.msra.mxu0 %v460
        %489 = vmatprep.subr.bf16.mxu0 0
        %490 = vmatpush1.bf16.msra.mxu0 %v459
        %491 = vmatprep.subr.bf16.mxu0 0
        %492 = vmatpush2.bf16.msra.mxu0 0
        %493 = vmatprep.subr.bf16.mxu0 0
        %494 = vmatpush2.bf16.msra.mxu0 0
        %495 = vmatprep.subr.bf16.mxu0 0
        %496 = vmatpush2.bf16.msra.mxu0 0
        %497 = vmatprep.subr.bf16.mxu0 0
        %498 = vmatpush2.bf16.msra.mxu0 0
        %499 = vmatprep.subr.bf16.mxu0 0
        %500 = vmatpush2.bf16.msra.mxu0 0
        %501 = vmatprep.subr.bf16.mxu0 0
        %502 = vmatpush2.bf16.msra.mxu0 0
        %503 = vmatprep.subr.bf16.mxu0 0
        %504 = vmatpush2.bf16.msra.mxu0 0
        %505 = vmatprep.subr.bf16.mxu0 0
        %506 = vmatpush2.bf16.msra.mxu0 0
        %507 = vmatprep.mubr.bf16.mxu0 0
        %508 = vmatmul.mubr.bf16.gmra.mxu0 %v403
        %v509 = vpop.f32.mrf.mxu0
        %v510 = vadd.f32 %v425, %v509
        %v511 = vpop.f32.mrf.mxu0
        %v512 = vpop.f32.mrf.mxu0
        %v513 = vadd.f32 %v425, %v512
        %v514 = vpop.f32.mrf.mxu0
        %515 = vdwg.mxu0
        %516 = vst [vmem:[%s304] sm:$0xff] %v510
        %517 = vst [vmem:[%s304 + $0x8] sm:$0xff] %v513
        %v518 = vxor.u32 %v510, 2147483648
        %v519 = vxor.u32 %v513, 2147483648
        %v520 = vmul.f32 %v518, 1.442695
        %v521 = vpow.pop %v520
        %v522 = vmul.f32 %v519, 1.442695
        %v523 = vpow.pop %v522
        %v524 = vadd.f32 %v521, 1.0
        %v525 = vadd.f32 %v523, 1.0
        %v526 = vrcp.pop %v524
        %v527 = vmul.f32 1.0, %v526
        %v528 = vrcp.pop %v525
        %v529 = vmul.f32 1.0, %v528
        %v530 = vmul.f32 %v527, 0.5
        %v531 = vmul.f32 %v529, 0.5
        %534 = vrot.lane.b32.xlu0 %v530, 126
        %v535 = vpop.permute.xlu0 %534
        %536 = vrot.lane.b32.xlu0 %v531, 126
        %v537 = vpop.permute.xlu0 %536
        %v540 = vsub.f32 %v527, %v535
        %v541 = vsub.f32 %v529, %v537
        %v542 = vadd.f32 %v527, %v535
        %v543 = vadd.f32 %v529, %v537
        %546 = vrot.lane.b32.xlu0 %v540, 120
        %v547 = vpop.permute.xlu0 %546
        %548 = vrot.lane.b32.xlu0 %v541, 120
        %v549 = vpop.permute.xlu0 %548
        %554 = vrot.lane.b32.xlu0 %v542, 122
        %v555 = vpop.permute.xlu0 %554
        %556 = vrot.lane.b32.xlu0 %v543, 122
        %v557 = vpop.permute.xlu0 %556
        %vm560 = vcmask 15360
        %v561 = vsel %vm560, %v547, %v555
        %v562 = vsel %vm560, %v549, %v557
        %s563 = smul.u32 %s30, 128
        %s564 = sld [smem:[#allocation3 + %s563]]
        %s565 = scvt.s32.f32 %s564
        %s566 = sadd.s32 %s563, 1
        %s567 = sld [smem:[#allocation3 + %s566]]
        %s568 = scvt.s32.f32 %s567
        %v569 = vlaneseq
        %v570 = vand.u32 %v569, 127
        %vm571 = vcmp.lt.s32.totalorder %v570, 0
        %v572 = vsub.s32 0, %v570
        %v573 = vsel %vm571, %v572, %v570
        %v574 = vshrl.u32 %v573, 1
        %v575 = vand.u32 %v573, 1
        %v576 = vsub.s32 0, %v575
        %v577 = vsel %vm571, %v576, %v575
        %vm578 = vcmp.ne.s32.totalorder %v577, 0
        %vm579 = vcmp.lt.s32.totalorder %v577, 0
        %vm580 = vmand %vm579, %vm578
        %v581 = vadd.s32 %v577, 2
        %v582 = vsel %vm580, %v581, %v577
        %vm583 = vcmp.eq.s32.totalorder %v582, 0
        %v584 = vstv %s565
        %v585 = vstv %s568
        %v586 = vsel %vm583, %v584, %v585
        %v587 = vmul.f32 %v561, %v586
        %v588 = vmul.f32 %v562, %v586
        %vm589 = vcmask 31744
        %590 = vst.msk [vmem:[%s316] sm:$0xff] %vm589, %v587
        %591 = vst.msk [vmem:[%s316 + $0x8] sm:$0xff] %vm589, %v588
        %s592 = sand.u32 %s148, 1
        %s593 = scalar_lea.sflag [#allocation6], %s592
        %s594 = sand.u32 %s148, 1
        %s595 = smul.addr %s594, 16
        %s596 = scalar_lea.vmem [#allocation10], %s595
        %p597 = scmp.lt.s32.totalorder %s30, 1
        %s598 = scalar_select %p597, %s30, 1
        %s599 = smul.addr %s598, 2
        %s600 = smul.addr %s599, 8
        %s601 = scalar_lea.vmem %s7, %s600
        // Predicated region
        $region53: #{tpu_custom_call.1} parent=39 // pred_check
          %p602 = pneg %p158
        $region54: #{tpu_custom_call.1} parent=39 // pred_check_branch
          %604 = sbr.rel (%p602) target = $region56
        $region55: #{tpu_custom_call.1} parent=39 // pred_region
          %s606 = ssub.s32 256, 256
          %607 = vsyncadd %s593, %s606
          %s608 = smul.addr %s30, 2
          %s609 = smul.addr %s608, 128
          %s610 = scalar_lea.hbm %s6, %s609
          %s611 = sshll.u32 %s596, 4
          %s612 = int_to_ptr.vmem [resolvable:$true] %s611
          %617 = dma.vmem_to_hbm [thread:$0]  %s612, 256, %s610, %s593, 128, 128, 8
        $region56: #{tpu_custom_call.1} parent=39 // pred_fallthru
          _
        // Predicated region
        $region57: #{tpu_custom_call.1} parent=39 // pred_check
          %p618 = pneg %p184
        $region58: #{tpu_custom_call.1} parent=39 // pred_check_branch
          %620 = sbr.rel (%p618) target = $region60
        $region59: #{tpu_custom_call.1} parent=39 // pred_region
          _
        $region60: #{tpu_custom_call.1} parent=39 // pred_fallthru
          _
      $region40: #{tpu_custom_call.1} parent=5 // pred_fallthru
        _
      %p621 = scmp.le.s32.totalorder 2, %s25
      // Predicated region
      $region61: #{tpu_custom_call.1} parent=5 // pred_check
        %p622 = pneg %p621
      $region62: #{tpu_custom_call.1} parent=5 // pred_check_branch
        %624 = sbr.rel (%p622) target = $region64
      $region63: #{tpu_custom_call.1} parent=5 // pred_region
        %s625 = ssub.s32 %s25, 2
        // Predicated region
        $region65: #{tpu_custom_call.1} parent=63 // pred_check
          %p626 = pneg %p164
        $region66: #{tpu_custom_call.1} parent=63 // pred_check_branch
          %628 = sbr.rel (%p626) target = $region68
        $region67: #{tpu_custom_call.1} parent=63 // pred_region
          %s629 = sand.u32 %s149, 1
          %s630 = scalar_lea.sflag [#allocation6], %s629
          %s631 = sand.u32 %s149, 1
          %s632 = smul.addr %s631, 16
          %s633 = scalar_lea.vmem [#allocation10], %s632
          %634 = dma.done %s630, 256
        $region68: #{tpu_custom_call.1} parent=63 // pred_fallthru
          _
        // Predicated region
        $region69: #{tpu_custom_call.1} parent=63 // pred_check
          %p635 = pneg %p190
        $region70: #{tpu_custom_call.1} parent=63 // pred_check_branch
          %637 = sbr.rel (%p635) target = $region72
        $region71: #{tpu_custom_call.1} parent=63 // pred_region
          %p638 = scmp.lt.s32.totalorder %s31, 1
          %s639 = scalar_select %p638, %s31, 1
          %s640 = smul.addr %s639, 2
          %s641 = smul.addr %s640, 8
          %s642 = scalar_lea.vmem %s7, %s641
        $region72: #{tpu_custom_call.1} parent=63 // pred_fallthru
          _
      $region64: #{tpu_custom_call.1} parent=5 // pred_fallthru
        _
    $region6: #{tpu_custom_call.1} parent=1 // loop_footer
      %s29 = sadd.s32 1, %s25
    $region7: #{tpu_custom_call.1} parent=1 // loop_footer_branch
      %24 = sbr.rel target = $region3
    $region8: #{tpu_custom_call.1} parent=1 // loop_exit
      _
    %643 = vsyncpa [#allocation5], 1
    %s644 = scalar_lea.sflag [#allocation5], 1
    %645 = vsyncpa %s644, 1
    %646 = vsyncpa [#allocation8], 1
    %647 = vsyncpa [#allocation6], 1
    %s648 = scalar_lea.sflag [#allocation6], 1
    %649 = vsyncpa %s648, 1

</llo_original>
